<compile_context>
chip_gen: v6e
topology: v6e:2x2x1
jax: 0.10.0
libtpu: 0.0.40
codegen_flags: <defaults>
</compile_context>

<pallas_src>
import jax
import jax.numpy as jnp
from jax import lax
from jax.experimental import pallas as pl
from jax.experimental.pallas import tpu as pltpu


_VPU_N_MAX = 16  # use VPU broadcasts/FMAs when N is small; MXU otherwise


# ---------------------------------------------------------------------------
# Shared kernel math
# ---------------------------------------------------------------------------
def _gram_update(xt_f32, N):
    """Partial Gram X @ X^T of an (N, TM) f32 tile."""
    if N <= _VPU_N_MAX:
        # VPU path: per column j, G[:, j] += sum_lanes(x * broadcast(x[j])).
        cols = [jnp.sum(xt_f32 * xt_f32[j:j + 1, :], axis=-1, keepdims=True)
                for j in range(N)]
        return jnp.concatenate(cols, axis=-1)
    return lax.dot_general(xt_f32, xt_f32, (((1,), (1,)), ((), ())),
                           preferred_element_type=jnp.float32)


def _attn_from_gram(G, gamma, N):
    """gamma * softmax(rowmax(E) - E), E = cosine similarities from the Gram."""
    ii = lax.broadcasted_iota(jnp.int32, (N, N), 0)
    jj = lax.broadcasted_iota(jnp.int32, (N, N), 1)
    gd = jnp.where(ii == jj, G, 0.0)
    diag_col = jnp.sum(gd, axis=1, keepdims=True)      # (N, 1) = ||x_i||^2
    diag_row = jnp.sum(gd, axis=0, keepdims=True)      # (1, N)
    eps2 = jnp.float32(1e-24)                           # F.normalize eps = 1e-12
    r_col = lax.rsqrt(jnp.maximum(diag_col, eps2))
    r_row = lax.rsqrt(jnp.maximum(diag_row, eps2))
    energy = G * r_col * r_row                          # in [-1, 1]
    row_max = jnp.max(energy, axis=-1, keepdims=True)
    e = jnp.exp(row_max - energy)                       # bounded in [1, e^2]
    attn = e / jnp.sum(e, axis=-1, keepdims=True)       # exact: tiny (N, N) epilogue
    return gamma * attn


def _apply_attn(attn_scaled, xt_f32, N):
    """attn_scaled @ x + x (attn already carries gamma)."""
    if N <= _VPU_N_MAX:
        out = xt_f32
        for j in range(N):
            out = out + attn_scaled[:, j:j + 1] * xt_f32[j:j + 1, :]
        return out
    return xt_f32 + jnp.dot(attn_scaled, xt_f32,
                            preferred_element_type=jnp.float32)


# ---------------------------------------------------------------------------
# Kernels
# ---------------------------------------------------------------------------
def _make_fused_kernel(N):
    def kernel(gamma_ref, x_ref, o_ref):
        xt = x_ref[0].astype(jnp.float32)               # (N, M) whole slab
        G = _gram_update(xt, N)
        attn = _attn_from_gram(G, gamma_ref[0], N)
        o_ref[0] = _apply_attn(attn, xt, N).astype(o_ref.dtype)
    return kernel


def _make_attn_kernel(N):
    def kernel(gamma_ref, x_ref, attn_ref, g_acc):
        m = pl.program_id(1)

        @pl.when(m == 0)
        def _():
            g_acc[...] = jnp.zeros_like(g_acc)

        xt = x_ref[0].astype(jnp.float32)               # (N, TM)
        g_acc[...] += _gram_update(xt, N)

        @pl.when(m == pl.num_programs(1) - 1)
        def _():
            attn_ref[0] = _attn_from_gram(g_acc[...], gamma_ref[0], N)
    return kernel


def _make_out_kernel(N):
    def kernel(attn_ref, x_ref, o_ref):
        xt = x_ref[0].astype(jnp.float32)               # (N, TM)
        o_ref[0] = _apply_attn(attn_ref[0], xt, N).astype(o_ref.dtype)
    return kernel


# ---------------------------------------------------------------------------
# Wrapper
# ---------------------------------------------------------------------------
def _round_up(v, m):
    return (v + m - 1) // m * m


def _vmem_capacity_bytes():
    try:
        return int(pltpu.get_tpu_info().vmem_capacity_bytes)
    except Exception:
        return 64 << 20  # conservative: v7x per-TensorCore VMEM


def _two_pass_block_bytes(vmem_cap, itemsize):
    """Target bytes per (N, TM) block, budgeting 4 x-dtype buffers + f32 temps."""
    budget = (vmem_cap * 7) // 10 - (2 << 20)
    denom = 4 + (12 // itemsize)
    return max(1 << 20, min(8 << 20, budget // denom))


def _choose_tm(M, N, itemsize, target_block_bytes):
    """TM multiple of 128, ~target_block_bytes per (N, TM) block; M padded to
    n_m * TM (padding is at most ~128 * n_m columns of zeros)."""
    target_tm = max(128, (target_block_bytes // max(1, N * itemsize)) // 128 * 128)
    if M <= target_tm:
        tm = _round_up(M, 128)
        return tm, tm
    n_m = pl.cdiv(M, target_tm)
    tm = _round_up(pl.cdiv(M, n_m), 128)
    return tm, tm * n_m


def lam_module(x, gamma, *, force_two_pass=False):
    """LAM_Module forward. x: (B, N, C, H, W); gamma: f32[1]. -> (B, N*C, H, W)."""
    B, N, C, H, W = x.shape
    M = C * H * W
    x_flat = x.reshape(B, N, M)
    gamma = jnp.asarray(gamma, jnp.float32).reshape((1,))

    itemsize = jnp.dtype(x.dtype).itemsize
    vmem_cap = _vmem_capacity_bytes()

    # ---- Fused single-pass path: whole (N, M) slab per batch fits in VMEM ----
    slab_bytes = N * M * itemsize
    f32_slab = N * M * 4
    fused_need = 4 * slab_bytes + 3 * f32_slab + (1 << 20)  # 2x in + 2x out + f32 temps
    fused_budget = (vmem_cap * 5) // 8
    if not force_two_pass and fused_need <= fused_budget:
        out_flat = pl.pallas_call(
            _make_fused_kernel(N),
            out_shape=jax.ShapeDtypeStruct((B, N, M), x.dtype),
            grid=(B,),
            in_specs=[
                pl.BlockSpec(memory_space=pltpu.MemorySpace.SMEM),   # gamma
                pl.BlockSpec((1, N, M), lambda b: (b, 0, 0)),
            ],
            out_specs=pl.BlockSpec((1, N, M), lambda b: (b, 0, 0)),
            compiler_params=pltpu.CompilerParams(
                dimension_semantics=("parallel",),
                vmem_limit_bytes=int(min(max(fused_need + (2 << 20), 32 << 20),
                                         (vmem_cap * 3) // 4))),
        )(gamma, x_flat)
        return out_flat.reshape(B, N * C, H, W)

    # ---- Two-pass streaming path --------------------------------------------
    TM, M_pad = _choose_tm(M, N, itemsize, _two_pass_block_bytes(vmem_cap, itemsize))
    if M_pad != M:
        # Zero columns are inert for the Gram and for attn @ x.
        x_flat = jnp.pad(x_flat, ((0, 0), (0, 0), (0, M_pad - M)))
    num_m = M_pad // TM

    x_blk = N * TM * itemsize
    f32_blk = N * TM * 4
    attn_bytes = N * N * 4
    vmem_need = 4 * x_blk + 3 * f32_blk + 4 * attn_bytes + (2 << 20)
    vmem_limit = int(min(max(vmem_need, 32 << 20), (vmem_cap * 3) // 4))

    cp_reduce = pltpu.CompilerParams(
        dimension_semantics=("parallel", "arbitrary"),
        vmem_limit_bytes=vmem_limit)
    cp_par = pltpu.CompilerParams(
        dimension_semantics=("parallel", "parallel"),
        vmem_limit_bytes=vmem_limit)

    # Pass 1: gamma-scaled attention matrix (B, N, N) in f32.
    attn = pl.pallas_call(
        _make_attn_kernel(N),
        out_shape=jax.ShapeDtypeStruct((B, N, N), jnp.float32),
        grid=(B, num_m),
        in_specs=[
            pl.BlockSpec(memory_space=pltpu.MemorySpace.SMEM),       # gamma
            pl.BlockSpec((1, N, TM), lambda b, m: (b, 0, m)),
        ],
        out_specs=pl.BlockSpec((1, N, N), lambda b, m: (b, 0, 0)),
        scratch_shapes=[pltpu.VMEM((N, N), jnp.float32)],
        compiler_params=cp_reduce,
    )(gamma, x_flat)

    # Pass 2: out = attn @ x + x, streamed over M tiles, fully parallel.
    out_flat = pl.pallas_call(
        _make_out_kernel(N),
        out_shape=jax.ShapeDtypeStruct((B, N, M_pad), x.dtype),
        grid=(B, num_m),
        in_specs=[
            pl.BlockSpec((1, N, N), lambda b, m: (b, 0, 0)),         # attn (scaled)
            pl.BlockSpec((1, N, TM), lambda b, m: (b, 0, m)),        # x tile
        ],
        out_specs=pl.BlockSpec((1, N, TM), lambda b, m: (b, 0, m)),
        compiler_params=cp_par,
    )(attn, x_flat)

    if M_pad != M:
        out_flat = out_flat[:, :, :M]
    return out_flat.reshape(B, N * C, H, W)


# ---------------------------------------------------------------------------
# Pure-JAX reference mirroring the PyTorch forward.
# ---------------------------------------------------------------------------
def lam_reference(x, gamma):
    B, N, C, H, W = x.shape
    M = C * H * W
    pq = x.reshape(B, N, M)
    pk = jnp.transpose(pq, (0, 2, 1))
    qn = pq / jnp.maximum(jnp.linalg.norm(pq, axis=-1, keepdims=True), 1e-12)
    kn = pk / jnp.maximum(jnp.linalg.norm(pk, axis=-2, keepdims=True), 1e-12)
    energy = jnp.einsum("bnm,bmk->bnk", qn, kn, precision=lax.Precision.HIGHEST)
    energy_new = jnp.max(energy, axis=-1, keepdims=True) - energy
    attn = jax.nn.softmax(energy_new, axis=-1)
    out = jnp.einsum("bnk,bkm->bnm", attn, pq,
                     precision=lax.Precision.HIGHEST).reshape(B, N, C, H, W)
    out = gamma * out + x
    return out.reshape(B, N * C, H, W)


if __name__ == "__main__":
    key = jax.random.PRNGKey(0)
    B, N, C, H, W = 2, 8, 4, 16, 16
    x = jax.random.normal(key, (B, N, C, H, W), dtype=jnp.float32)

    gamma0 = jnp.zeros((1,), dtype=jnp.float32)   # LAM_Module init: gamma = zeros(1)
    gamma1 = jnp.array([0.5], dtype=jnp.float32)

    ref0 = lam_reference(x, gamma0[0])
    ref1 = lam_reference(x, gamma1[0])

    # Fused single-pass path (per-batch slab fits VMEM at these shapes).
    out0 = lam_module(x, gamma0)
    jax.block_until_ready(out0)
    assert out0.shape == (B, N * C, H, W)
    assert jnp.allclose(out0, ref0, atol=1e-5, rtol=1e-5)

    out1 = lam_module(x, gamma1)
    jax.block_until_ready(out1)
    assert jnp.allclose(out1, ref1, atol=1e-3, rtol=1e-3)

    # Two-pass streaming path (Gram accumulation + streamed attn @ x + x).
    out2 = lam_module(x, gamma1, force_two_pass=True)
    jax.block_until_ready(out2)
    assert jnp.allclose(out2, ref1, atol=1e-3, rtol=1e-3)

    print("KERNEL_OK")
</pallas_src>

<mosaic_0001>
module attributes {stable_mosaic.version = 11 : i64} {
  func.func @kernel(%arg0: i32, %arg1: memref<1xf32, #tpu.memory_space<smem>>, %arg2: memref<1x8x1024xf32, #tpu.memory_space<vmem>>, %arg3: memref<1x8x1024xf32, #tpu.memory_space<vmem>>) attributes {dimension_semantics = [#tpu.dimension_semantics<parallel>], iteration_bounds = array<i64: 2>, scalar_prefetch = 0 : i64, scratch_operands = 0 : i64, tpu.core_type = #tpu.core_type<tc>, window_params = [{transform_indices = @transform_0, window_bounds = array<i64: 1>}, {transform_indices = @transform_1, window_bounds = array<i64: 1, 8, 1024>}, {transform_indices = @transform_2, window_bounds = array<i64: 1, 8, 1024>}]} {
    %c0 = arith.constant 0 : index
    %c0_0 = arith.constant 0 : index
    %c0_1 = arith.constant 0 : index
    %0 = vector.load %arg2[%c0, %c0_0, %c0_1] : memref<1x8x1024xf32, #tpu.memory_space<vmem>>, vector<1x8x1024xf32>
    %1 = vector.shape_cast %0 : vector<1x8x1024xf32> to vector<8x1024xf32>
    %2 = vector.extract_strided_slice %1 {offsets = [0, 0], sizes = [1, 1024], strides = [1, 1]} : vector<8x1024xf32> to vector<1x1024xf32>
    %3 = vector.broadcast %2 : vector<1x1024xf32> to vector<8x1024xf32>
    %4 = arith.mulf %1, %3 : vector<8x1024xf32>
    %cst = arith.constant dense<0.000000e+00> : vector<8xf32>
    %5 = vector.multi_reduction <add>, %4, %cst [1] : vector<8x1024xf32> to vector<8xf32>
    %6 = vector.shape_cast %5 : vector<8xf32> to vector<8x1xf32>
    %7 = vector.extract_strided_slice %1 {offsets = [1, 0], sizes = [1, 1024], strides = [1, 1]} : vector<8x1024xf32> to vector<1x1024xf32>
    %8 = vector.broadcast %7 : vector<1x1024xf32> to vector<8x1024xf32>
    %9 = arith.mulf %1, %8 : vector<8x1024xf32>
    %cst_2 = arith.constant dense<0.000000e+00> : vector<8xf32>
    %10 = vector.multi_reduction <add>, %9, %cst_2 [1] : vector<8x1024xf32> to vector<8xf32>
    %11 = vector.shape_cast %10 : vector<8xf32> to vector<8x1xf32>
    %12 = vector.extract_strided_slice %1 {offsets = [2, 0], sizes = [1, 1024], strides = [1, 1]} : vector<8x1024xf32> to vector<1x1024xf32>
    %13 = vector.broadcast %12 : vector<1x1024xf32> to vector<8x1024xf32>
    %14 = arith.mulf %1, %13 : vector<8x1024xf32>
    %cst_3 = arith.constant dense<0.000000e+00> : vector<8xf32>
    %15 = vector.multi_reduction <add>, %14, %cst_3 [1] : vector<8x1024xf32> to vector<8xf32>
    %16 = vector.shape_cast %15 : vector<8xf32> to vector<8x1xf32>
    %17 = vector.extract_strided_slice %1 {offsets = [3, 0], sizes = [1, 1024], strides = [1, 1]} : vector<8x1024xf32> to vector<1x1024xf32>
    %18 = vector.broadcast %17 : vector<1x1024xf32> to vector<8x1024xf32>
    %19 = arith.mulf %1, %18 : vector<8x1024xf32>
    %cst_4 = arith.constant dense<0.000000e+00> : vector<8xf32>
    %20 = vector.multi_reduction <add>, %19, %cst_4 [1] : vector<8x1024xf32> to vector<8xf32>
    %21 = vector.shape_cast %20 : vector<8xf32> to vector<8x1xf32>
    %22 = vector.extract_strided_slice %1 {offsets = [4, 0], sizes = [1, 1024], strides = [1, 1]} : vector<8x1024xf32> to vector<1x1024xf32>
    %23 = vector.broadcast %22 : vector<1x1024xf32> to vector<8x1024xf32>
    %24 = arith.mulf %1, %23 : vector<8x1024xf32>
    %cst_5 = arith.constant dense<0.000000e+00> : vector<8xf32>
    %25 = vector.multi_reduction <add>, %24, %cst_5 [1] : vector<8x1024xf32> to vector<8xf32>
    %26 = vector.shape_cast %25 : vector<8xf32> to vector<8x1xf32>
    %27 = vector.extract_strided_slice %1 {offsets = [5, 0], sizes = [1, 1024], strides = [1, 1]} : vector<8x1024xf32> to vector<1x1024xf32>
    %28 = vector.broadcast %27 : vector<1x1024xf32> to vector<8x1024xf32>
    %29 = arith.mulf %1, %28 : vector<8x1024xf32>
    %cst_6 = arith.constant dense<0.000000e+00> : vector<8xf32>
    %30 = vector.multi_reduction <add>, %29, %cst_6 [1] : vector<8x1024xf32> to vector<8xf32>
    %31 = vector.shape_cast %30 : vector<8xf32> to vector<8x1xf32>
    %32 = vector.extract_strided_slice %1 {offsets = [6, 0], sizes = [1, 1024], strides = [1, 1]} : vector<8x1024xf32> to vector<1x1024xf32>
    %33 = vector.broadcast %32 : vector<1x1024xf32> to vector<8x1024xf32>
    %34 = arith.mulf %1, %33 : vector<8x1024xf32>
    %cst_7 = arith.constant dense<0.000000e+00> : vector<8xf32>
    %35 = vector.multi_reduction <add>, %34, %cst_7 [1] : vector<8x1024xf32> to vector<8xf32>
    %36 = vector.shape_cast %35 : vector<8xf32> to vector<8x1xf32>
    %37 = vector.extract_strided_slice %1 {offsets = [7, 0], sizes = [1, 1024], strides = [1, 1]} : vector<8x1024xf32> to vector<1x1024xf32>
    %38 = vector.broadcast %37 : vector<1x1024xf32> to vector<8x1024xf32>
    %39 = arith.mulf %1, %38 : vector<8x1024xf32>
    %cst_8 = arith.constant dense<0.000000e+00> : vector<8xf32>
    %40 = vector.multi_reduction <add>, %39, %cst_8 [1] : vector<8x1024xf32> to vector<8xf32>
    %41 = vector.shape_cast %40 : vector<8xf32> to vector<8x1xf32>
    %42 = tpu.concatenate %6, %11, %16, %21, %26, %31, %36, %41 in 1 : vector<8x1xf32>, vector<8x1xf32>, vector<8x1xf32>, vector<8x1xf32>, vector<8x1xf32>, vector<8x1xf32>, vector<8x1xf32>, vector<8x1xf32> -> vector<8x8xf32>
    %c0_9 = arith.constant 0 : index
    %43 = memref.load %arg1[%c0_9] : memref<1xf32, #tpu.memory_space<smem>>
    %44 = tpu.iota {dimensions = array<i32: 0>} : vector<8x8xi32>
    %45 = tpu.iota {dimensions = array<i32: 1>} : vector<8x8xi32>
    %46 = arith.cmpi eq, %44, %45 : vector<8x8xi32>
    %cst_10 = arith.constant 0.000000e+00 : f32
    %47 = vector.broadcast %cst_10 : f32 to vector<8x8xf32>
    %48 = arith.select %46, %42, %47 : vector<8x8xi1>, vector<8x8xf32>
    %cst_11 = arith.constant dense<0.000000e+00> : vector<8xf32>
    %49 = vector.multi_reduction <add>, %48, %cst_11 [1] : vector<8x8xf32> to vector<8xf32>
    %50 = vector.shape_cast %49 : vector<8xf32> to vector<8x1xf32>
    %cst_12 = arith.constant dense<0.000000e+00> : vector<8xf32>
    %51 = vector.multi_reduction <add>, %48, %cst_12 [0] : vector<8x8xf32> to vector<8xf32>
    %52 = vector.shape_cast %51 : vector<8xf32> to vector<1x8xf32>
    %cst_13 = arith.constant 1.000000e-24 : f32
    %53 = vector.broadcast %cst_13 : f32 to vector<8x1xf32>
    %54 = arith.maximumf %50, %53 : vector<8x1xf32>
    %55 = math.rsqrt %54 : vector<8x1xf32>
    %cst_14 = arith.constant 1.000000e-24 : f32
    %56 = vector.broadcast %cst_14 : f32 to vector<1x8xf32>
    %57 = arith.maximumf %52, %56 : vector<1x8xf32>
    %58 = math.rsqrt %57 : vector<1x8xf32>
    %59 = vector.broadcast %55 : vector<8x1xf32> to vector<8x8xf32>
    %60 = arith.mulf %42, %59 : vector<8x8xf32>
    %61 = vector.broadcast %58 : vector<1x8xf32> to vector<8x8xf32>
    %62 = arith.mulf %60, %61 : vector<8x8xf32>
    %cst_15 = arith.constant dense<0xFF800000> : vector<8xf32>
    %63 = vector.multi_reduction <maximumf>, %62, %cst_15 [1] : vector<8x8xf32> to vector<8xf32>
    %64 = vector.shape_cast %63 : vector<8xf32> to vector<8x1xf32>
    %65 = vector.broadcast %64 : vector<8x1xf32> to vector<8x8xf32>
    %66 = arith.subf %65, %62 : vector<8x8xf32>
    %67 = math.exp %66 : vector<8x8xf32>
    %cst_16 = arith.constant dense<0.000000e+00> : vector<8xf32>
    %68 = vector.multi_reduction <add>, %67, %cst_16 [1] : vector<8x8xf32> to vector<8xf32>
    %69 = vector.shape_cast %68 : vector<8xf32> to vector<8x1xf32>
    %70 = vector.broadcast %69 : vector<8x1xf32> to vector<8x8xf32>
    %71 = arith.divf %67, %70 : vector<8x8xf32>
    %72 = vector.broadcast %43 : f32 to vector<8x8xf32>
    %73 = arith.mulf %72, %71 : vector<8x8xf32>
    %74 = vector.extract_strided_slice %73 {offsets = [0, 0], sizes = [8, 1], strides = [1, 1]} : vector<8x8xf32> to vector<8x1xf32>
    %75 = vector.extract_strided_slice %1 {offsets = [0, 0], sizes = [1, 1024], strides = [1, 1]} : vector<8x1024xf32> to vector<1x1024xf32>
    %76 = vector.broadcast %74 : vector<8x1xf32> to vector<8x1024xf32>
    %77 = vector.broadcast %75 : vector<1x1024xf32> to vector<8x1024xf32>
    %78 = arith.mulf %76, %77 : vector<8x1024xf32>
    %79 = arith.addf %1, %78 : vector<8x1024xf32>
    %80 = vector.extract_strided_slice %73 {offsets = [0, 1], sizes = [8, 1], strides = [1, 1]} : vector<8x8xf32> to vector<8x1xf32>
    %81 = vector.extract_strided_slice %1 {offsets = [1, 0], sizes = [1, 1024], strides = [1, 1]} : vector<8x1024xf32> to vector<1x1024xf32>
    %82 = vector.broadcast %80 : vector<8x1xf32> to vector<8x1024xf32>
    %83 = vector.broadcast %81 : vector<1x1024xf32> to vector<8x1024xf32>
    %84 = arith.mulf %82, %83 : vector<8x1024xf32>
    %85 = arith.addf %79, %84 : vector<8x1024xf32>
    %86 = vector.extract_strided_slice %73 {offsets = [0, 2], sizes = [8, 1], strides = [1, 1]} : vector<8x8xf32> to vector<8x1xf32>
    %87 = vector.extract_strided_slice %1 {offsets = [2, 0], sizes = [1, 1024], strides = [1, 1]} : vector<8x1024xf32> to vector<1x1024xf32>
    %88 = vector.broadcast %86 : vector<8x1xf32> to vector<8x1024xf32>
    %89 = vector.broadcast %87 : vector<1x1024xf32> to vector<8x1024xf32>
    %90 = arith.mulf %88, %89 : vector<8x1024xf32>
    %91 = arith.addf %85, %90 : vector<8x1024xf32>
    %92 = vector.extract_strided_slice %73 {offsets = [0, 3], sizes = [8, 1], strides = [1, 1]} : vector<8x8xf32> to vector<8x1xf32>
    %93 = vector.extract_strided_slice %1 {offsets = [3, 0], sizes = [1, 1024], strides = [1, 1]} : vector<8x1024xf32> to vector<1x1024xf32>
    %94 = vector.broadcast %92 : vector<8x1xf32> to vector<8x1024xf32>
    %95 = vector.broadcast %93 : vector<1x1024xf32> to vector<8x1024xf32>
    %96 = arith.mulf %94, %95 : vector<8x1024xf32>
    %97 = arith.addf %91, %96 : vector<8x1024xf32>
    %98 = vector.extract_strided_slice %73 {offsets = [0, 4], sizes = [8, 1], strides = [1, 1]} : vector<8x8xf32> to vector<8x1xf32>
    %99 = vector.extract_strided_slice %1 {offsets = [4, 0], sizes = [1, 1024], strides = [1, 1]} : vector<8x1024xf32> to vector<1x1024xf32>
    %100 = vector.broadcast %98 : vector<8x1xf32> to vector<8x1024xf32>
    %101 = vector.broadcast %99 : vector<1x1024xf32> to vector<8x1024xf32>
    %102 = arith.mulf %100, %101 : vector<8x1024xf32>
    %103 = arith.addf %97, %102 : vector<8x1024xf32>
    %104 = vector.extract_strided_slice %73 {offsets = [0, 5], sizes = [8, 1], strides = [1, 1]} : vector<8x8xf32> to vector<8x1xf32>
    %105 = vector.extract_strided_slice %1 {offsets = [5, 0], sizes = [1, 1024], strides = [1, 1]} : vector<8x1024xf32> to vector<1x1024xf32>
    %106 = vector.broadcast %104 : vector<8x1xf32> to vector<8x1024xf32>
    %107 = vector.broadcast %105 : vector<1x1024xf32> to vector<8x1024xf32>
    %108 = arith.mulf %106, %107 : vector<8x1024xf32>
    %109 = arith.addf %103, %108 : vector<8x1024xf32>
    %110 = vector.extract_strided_slice %73 {offsets = [0, 6], sizes = [8, 1], strides = [1, 1]} : vector<8x8xf32> to vector<8x1xf32>
    %111 = vector.extract_strided_slice %1 {offsets = [6, 0], sizes = [1, 1024], strides = [1, 1]} : vector<8x1024xf32> to vector<1x1024xf32>
    %112 = vector.broadcast %110 : vector<8x1xf32> to vector<8x1024xf32>
    %113 = vector.broadcast %111 : vector<1x1024xf32> to vector<8x1024xf32>
    %114 = arith.mulf %112, %113 : vector<8x1024xf32>
    %115 = arith.addf %109, %114 : vector<8x1024xf32>
    %116 = vector.extract_strided_slice %73 {offsets = [0, 7], sizes = [8, 1], strides = [1, 1]} : vector<8x8xf32> to vector<8x1xf32>
    %117 = vector.extract_strided_slice %1 {offsets = [7, 0], sizes = [1, 1024], strides = [1, 1]} : vector<8x1024xf32> to vector<1x1024xf32>
    %118 = vector.broadcast %116 : vector<8x1xf32> to vector<8x1024xf32>
    %119 = vector.broadcast %117 : vector<1x1024xf32> to vector<8x1024xf32>
    %120 = arith.mulf %118, %119 : vector<8x1024xf32>
    %121 = arith.addf %115, %120 : vector<8x1024xf32>
    %c0_17 = arith.constant 0 : index
    %c0_18 = arith.constant 0 : index
    %c0_19 = arith.constant 0 : index
    %122 = vector.load %arg3[%c0_17, %c0_18, %c0_19] : memref<1x8x1024xf32, #tpu.memory_space<vmem>>, vector<1x8x1024xf32>
    %123 = vector.shape_cast %122 : vector<1x8x1024xf32> to vector<8x1024xf32>
    %124 = vector.shape_cast %121 : vector<8x1024xf32> to vector<1x8x1024xf32>
    tpu.vector_store %arg3[%c0_17, %c0_18, %c0_19], %124 {strides = array<i32>} : memref<1x8x1024xf32, #tpu.memory_space<vmem>>, vector<1x8x1024xf32>,
    return
  }
  func.func @transform_0(%arg0: i32) -> i32 {
    %c0_i32 = arith.constant 0 : i32
    %c0_i32_0 = arith.constant 0 : i32
    return %c0_i32 : i32
  }
  func.func @transform_1(%arg0: i32) -> (i32, i32, i32) {
    %c0_i32 = arith.constant 0 : i32
    %c0_i32_0 = arith.constant 0 : i32
    %c0_i32_1 = arith.constant 0 : i32
    return %arg0, %c0_i32, %c0_i32_0 : i32, i32, i32
  }
  func.func @transform_2(%arg0: i32) -> (i32, i32, i32) {
    %c0_i32 = arith.constant 0 : i32
    %c0_i32_0 = arith.constant 0 : i32
    %c0_i32_1 = arith.constant 0 : i32
    return %arg0, %c0_i32, %c0_i32_0 : i32, i32, i32
  }
}

</mosaic_0001>

<llo_original>
// kernel: tpu_custom_call.1
$region0: #{tpu_custom_call.1}
  #allocation0 [shape = 'u32[]', space=smem, size = 0x4, offset = 0x4, fixed_abs, tag = 'smem constant byte address 0x4 - core index']
  #allocation1 [shape = 'u32[144,128]{1,0:T(1,128)}', space=vmem, size = 0x12000, scoped, tag = 'internal scratch']
  #allocation2 [shape = 'f32[1]{0:T(128)S(6)}', space=smem, size = 0x200, scoped, tag = 'scoped memory for tpu_custom_call.1']
  %s0 = inlined_call_operand.<no memory space> [shape: f32[1], index: 0, kind: input, shape index: {}]
  %s1 = inlined_call_operand.hbm [shape: f32[2,8,1024], index: 1, kind: input, shape index: {}]
  %s2 = inlined_call_operand.hbm [shape: f32[2,8,1024], index: 2, kind: output, shape index: {}]
  %s3 = sld [smem:[#allocation0]]
  $region45: #{tpu_custom_call.1} parent=0
    _
  %s5 = ssub.s32 1, %s3
  %s6 = scalar_select 0, %s5, %s3
  %7 = sst [smem:[#allocation2]] %s0
  $region1: #{tpu_custom_call.1} parent=0
    #allocation3 [shape = 'u8[65536]{0}', space=vmem, size = 0x10000, scoped, tag = 'input window, operand 1']
    #allocation4 [shape = 's32[2]{0}', space=sflag, size = 0x8, scoped, tag = 'scoped memory for tpu_custom_call.1']
    #allocation5 [shape = 's32[2]{0}', space=sflag, size = 0x8, scoped, tag = 'scoped memory for tpu_custom_call.1']
    #allocation6 [shape = 'u8[65536]{0}', space=vmem, size = 0x10000, scoped, tag = 'output window, operand 0']
    %8 = vsyncpa [#allocation4], 0
    %s9 = scalar_lea.sflag [#allocation4], 1
    %10 = vsyncpa %s9, 0
    %11 = vsyncpa [#allocation5], 0
    %s12 = scalar_lea.sflag [#allocation5], 1
    %13 = vsyncpa %s12, 0
    loop: start=0, step=1, limit=4
    $region2: #{tpu_custom_call.1} parent=1 // loop_pre_header
      _
    $region3: #{tpu_custom_call.1} parent=1 // loop_header
      %s15 = sphi 0, %s19
      %p16 = scmp.ge.s32.totalorder %s15, 4
      %s23 = sphi 0, %s23
      %s25 = sphi 0, %s23
      %s26 = sphi 0, %s25
      %s40 = sphi 0, %s26
      %s46 = sphi 0, %s48
      %s49 = sphi 0, %s46
      %s50 = sphi 0, %s49
      %s66 = sphi 0, %s50
      %s72 = sphi 0, %s74
      %s75 = sphi 0, %s72
      %s76 = sphi 0, %s75
      %s92 = sphi 0, %s76
    $region4: #{tpu_custom_call.1} parent=1 // loop_header_branch
      %18 = sbr.rel (%p16) target = $region8
    $region5: #{tpu_custom_call.1} parent=1 // loop_body
      %s20 = ssub.s32 %s15, 1
      %s21 = ssub.s32 %s15, 2
      %s22 = sadd.s32 %s15, 1
      %s24 = sadd.s32 %s23, 1
      %p27 = scmp.eq.s32.totalorder %s15, 1
      %p28 = scmp.ne.s32.totalorder %s23, %s25
      %p29 = scmp.eq.s32.totalorder %s15, 0
      %p30 = por %p28, %p29
      %p31 = scmp.ne.s32.totalorder %s23, %s25
      %p32 = scmp.eq.s32.totalorder %s20, 1
      %p33 = por %p31, %p32
      %p34 = scmp.ne.s32.totalorder %s25, %s26
      %p35 = scmp.eq.s32.totalorder %s20, 0
      %p36 = por %p34, %p35
      %p37 = scmp.ne.s32.totalorder %s25, %s26
      %p38 = scmp.eq.s32.totalorder %s21, 1
      %p39 = por %p37, %p38
      %p41 = scmp.ne.s32.totalorder %s26, %s40
      %p42 = scmp.eq.s32.totalorder %s21, 0
      %p43 = por %p41, %p42
      %s44 = ssub.s32 %s15, %s22
      %p45 = scmp.eq.s32.totalorder %s44, 0
      %s47 = sadd.s32 %s46, 1
      %s48 = scalar_select %p45, %s46, %s47
      %p51 = pneg %p45
      %p52 = scmp.eq.s32.totalorder %s15, 1
      %p53 = por %p51, %p52
      %p54 = scmp.ne.s32.totalorder %s46, %s49
      %p55 = scmp.eq.s32.totalorder %s15, 0
      %p56 = por %p54, %p55
      %p57 = scmp.ne.s32.totalorder %s46, %s49
      %p58 = scmp.eq.s32.totalorder %s20, 1
      %p59 = por %p57, %p58
      %p60 = scmp.ne.s32.totalorder %s49, %s50
      %p61 = scmp.eq.s32.totalorder %s20, 0
      %p62 = por %p60, %p61
      %p63 = scmp.ne.s32.totalorder %s49, %s50
      %p64 = scmp.eq.s32.totalorder %s21, 1
      %p65 = por %p63, %p64
      %p67 = scmp.ne.s32.totalorder %s50, %s66
      %p68 = scmp.eq.s32.totalorder %s21, 0
      %p69 = por %p67, %p68
      %s70 = ssub.s32 %s15, %s22
      %p71 = scmp.eq.s32.totalorder %s70, 0
      %s73 = sadd.s32 %s72, 1
      %s74 = scalar_select %p71, %s72, %s73
      %p77 = pneg %p71
      %p78 = scmp.eq.s32.totalorder %s15, 1
      %p79 = por %p77, %p78
      %p80 = scmp.ne.s32.totalorder %s72, %s75
      %p81 = scmp.eq.s32.totalorder %s15, 0
      %p82 = por %p80, %p81
      %p83 = scmp.ne.s32.totalorder %s72, %s75
      %p84 = scmp.eq.s32.totalorder %s20, 1
      %p85 = por %p83, %p84
      %p86 = scmp.ne.s32.totalorder %s75, %s76
      %p87 = scmp.eq.s32.totalorder %s20, 0
      %p88 = por %p86, %p87
      %p89 = scmp.ne.s32.totalorder %s75, %s76
      %p90 = scmp.eq.s32.totalorder %s21, 1
      %p91 = por %p89, %p90
      %p93 = scmp.ne.s32.totalorder %s76, %s92
      %p94 = scmp.eq.s32.totalorder %s21, 0
      %p95 = por %p93, %p94
      %p96 = scmp.le.s32.totalorder 1, %s15
      %p97 = scmp.lt.s32.totalorder %s15, 3
      %p98 = pnand %p96, %p97
      %p99 = pneg %p98
      // Predicated region
      $region9: #{tpu_custom_call.1} parent=5 // pred_check
        _
      $region10: #{tpu_custom_call.1} parent=5 // pred_check_branch
        %101 = sbr.rel (%p98) target = $region12
      $region11: #{tpu_custom_call.1} parent=5 // pred_region
        %s102 = ssub.s32 %s15, 1
        // Predicated region
        $region13: #{tpu_custom_call.1} parent=11 // pred_check
          %p103 = pneg %p36
        $region14: #{tpu_custom_call.1} parent=11 // pred_check_branch
          %105 = sbr.rel (%p103) target = $region16
        $region15: #{tpu_custom_call.1} parent=11 // pred_region
          _
        $region16: #{tpu_custom_call.1} parent=11 // pred_fallthru
          _
      $region12: #{tpu_custom_call.1} parent=5 // pred_fallthru
        _
      %p106 = scmp.lt.s32.totalorder %s15, 2
      // Predicated region
      $region17: #{tpu_custom_call.1} parent=5 // pred_check
        %p107 = pneg %p106
      $region18: #{tpu_custom_call.1} parent=5 // pred_check_branch
        %109 = sbr.rel (%p107) target = $region20
      $region19: #{tpu_custom_call.1} parent=5 // pred_region
        // Predicated region
        $region21: #{tpu_custom_call.1} parent=19 // pred_check
          %p110 = pneg %p56
        $region22: #{tpu_custom_call.1} parent=19 // pred_check_branch
          %112 = sbr.rel (%p110) target = $region24
        $region23: #{tpu_custom_call.1} parent=19 // pred_region
          %s113 = sand.u32 %s46, 1
          %s114 = scalar_lea.sflag [#allocation4], %s113
          %s115 = sand.u32 %s46, 1
          %s116 = smul.addr %s115, 64
          %s117 = scalar_lea.vmem [#allocation3], %s116
          %s119 = ssub.s32 1024, 1024
          %120 = vsyncadd %s114, %s119
          %s121 = smul.addr %s15, 8
          %s122 = smul.addr %s121, 128
          %s123 = scalar_lea.hbm %s1, %s122
          %s125 = sshll.u32 %s117, 4
          %s126 = int_to_ptr.vmem [resolvable:$true] %s125
          %128 = dma.hbm_to_vmem [thread:$0]  %s123, 1024, %s126, %s114
        $region24: #{tpu_custom_call.1} parent=19 // pred_fallthru
          _
      $region20: #{tpu_custom_call.1} parent=5 // pred_fallthru
        _
      %p129 = scmp.le.s32.totalorder 1, %s15
      %p130 = scmp.lt.s32.totalorder %s15, 3
      %p131 = pnand %p129, %p130
      %p132 = pneg %p131
      // Predicated region
      $region25: #{tpu_custom_call.1} parent=5 // pred_check
        _
      $region26: #{tpu_custom_call.1} parent=5 // pred_check_branch
        %134 = sbr.rel (%p131) target = $region28
      $region27: #{tpu_custom_call.1} parent=5 // pred_region
        %s135 = ssub.s32 %s15, 1
        %s136 = sand.u32 %s49, 1
        %s137 = scalar_lea.sflag [#allocation4], %s136
        %s138 = sand.u32 %s49, 1
        %s139 = smul.addr %s138, 64
        %s140 = scalar_lea.vmem [#allocation3], %s139
        // Predicated region
        $region29: #{tpu_custom_call.1} parent=27 // pred_check
          %p141 = pneg %p62
        $region30: #{tpu_custom_call.1} parent=27 // pred_check_branch
          %143 = sbr.rel (%p141) target = $region32
        $region31: #{tpu_custom_call.1} parent=27 // pred_region
          %144 = dma.done %s137, 1024
        $region32: #{tpu_custom_call.1} parent=27 // pred_fallthru
          _
        %p145 = pneg %p36
        %p146 = pneg %p33
        %s147 = sand.u32 %s49, 1
        %s148 = scalar_lea.sflag [#allocation4], %s147
        %s149 = sand.u32 %s49, 1
        %s150 = smul.addr %s149, 64
        %s151 = scalar_lea.vmem [#allocation3], %s150
        %p152 = pneg %p62
        %p153 = pneg %p59
        %p154 = pneg %p88
        %p155 = pneg %p85
        %s156 = sand.u32 %s75, 1
        %s157 = scalar_lea.sflag [#allocation5], %s156
        %s158 = sand.u32 %s75, 1
        %s159 = smul.addr %s158, 64
        %s160 = scalar_lea.vmem [#allocation6], %s159
        %v161 = vld [vmem:[%s140] sm:$0xff]
        %v162 = vld [vmem:[%s140 + $0x8] sm:$0xff]
        %v163 = vld [vmem:[%s140 + $0x10] sm:$0xff]
        %v164 = vld [vmem:[%s140 + $0x18] sm:$0xff]
        %v165 = vld [vmem:[%s140 + $0x20] sm:$0xff]
        %v166 = vld [vmem:[%s140 + $0x28] sm:$0xff]
        %v167 = vld [vmem:[%s140 + $0x30] sm:$0xff]
        %v168 = vld [vmem:[%s140 + $0x38] sm:$0xff]
        %v169 = vlaneseq
        %v170 = vshrl.u32 %v169, 7
        %v171 = vsub.s32 0, %v170
        %v172 = vrot.slane %v161, %v171
        %v173 = vlaneseq
        %v174 = vshrl.u32 %v173, 7
        %v175 = vsub.s32 0, %v174
        %v176 = vrot.slane %v162, %v175
        %v177 = vlaneseq
        %v178 = vshrl.u32 %v177, 7
        %v179 = vsub.s32 0, %v178
        %v180 = vrot.slane %v163, %v179
        %v181 = vlaneseq
        %v182 = vshrl.u32 %v181, 7
        %v183 = vsub.s32 0, %v182
        %v184 = vrot.slane %v164, %v183
        %v185 = vlaneseq
        %v186 = vshrl.u32 %v185, 7
        %v187 = vsub.s32 0, %v186
        %v188 = vrot.slane %v165, %v187
        %v189 = vlaneseq
        %v190 = vshrl.u32 %v189, 7
        %v191 = vsub.s32 0, %v190
        %v192 = vrot.slane %v166, %v191
        %v193 = vlaneseq
        %v194 = vshrl.u32 %v193, 7
        %v195 = vsub.s32 0, %v194
        %v196 = vrot.slane %v167, %v195
        %v197 = vlaneseq
        %v198 = vshrl.u32 %v197, 7
        %v199 = vsub.s32 0, %v198
        %v200 = vrot.slane %v168, %v199
        %v201 = vmul.f32 %v161, %v172
        %v202 = vmul.f32 %v162, %v176
        %v203 = vmul.f32 %v163, %v180
        %v204 = vmul.f32 %v164, %v184
        %v205 = vmul.f32 %v165, %v188
        %v206 = vmul.f32 %v166, %v192
        %v207 = vmul.f32 %v167, %v196
        %v208 = vmul.f32 %v168, %v200
        %v209 = vadd.f32 %v201, %v202
        %v210 = vadd.f32 %v209, %v203
        %v211 = vadd.f32 %v210, %v204
        %v212 = vadd.f32 %v211, %v205
        %v213 = vadd.f32 %v212, %v206
        %v214 = vadd.f32 %v213, %v207
        %v215 = vadd.f32 %v214, %v208
        %216 = vadd.xlane.f32.xlu0 %v215
        %v217 = vpop.xlane.xlu0 %216
        %v218 = vlaneseq
        %v219 = vshrl.u32 %v218, 7
        %v220 = vsub.s32 1, %v219
        %v221 = vrot.slane %v161, %v220
        %v222 = vlaneseq
        %v223 = vshrl.u32 %v222, 7
        %v224 = vsub.s32 1, %v223
        %v225 = vrot.slane %v162, %v224
        %v226 = vlaneseq
        %v227 = vshrl.u32 %v226, 7
        %v228 = vsub.s32 1, %v227
        %v229 = vrot.slane %v163, %v228
        %v230 = vlaneseq
        %v231 = vshrl.u32 %v230, 7
        %v232 = vsub.s32 1, %v231
        %v233 = vrot.slane %v164, %v232
        %v234 = vlaneseq
        %v235 = vshrl.u32 %v234, 7
        %v236 = vsub.s32 1, %v235
        %v237 = vrot.slane %v165, %v236
        %v238 = vlaneseq
        %v239 = vshrl.u32 %v238, 7
        %v240 = vsub.s32 1, %v239
        %v241 = vrot.slane %v166, %v240
        %v242 = vlaneseq
        %v243 = vshrl.u32 %v242, 7
        %v244 = vsub.s32 1, %v243
        %v245 = vrot.slane %v167, %v244
        %v246 = vlaneseq
        %v247 = vshrl.u32 %v246, 7
        %v248 = vsub.s32 1, %v247
        %v249 = vrot.slane %v168, %v248
        %v250 = vmul.f32 %v161, %v221
        %v251 = vmul.f32 %v162, %v225
        %v252 = vmul.f32 %v163, %v229
        %v253 = vmul.f32 %v164, %v233
        %v254 = vmul.f32 %v165, %v237
        %v255 = vmul.f32 %v166, %v241
        %v256 = vmul.f32 %v167, %v245
        %v257 = vmul.f32 %v168, %v249
        %v258 = vadd.f32 %v250, %v251
        %v259 = vadd.f32 %v258, %v252
        %v260 = vadd.f32 %v259, %v253
        %v261 = vadd.f32 %v260, %v254
        %v262 = vadd.f32 %v261, %v255
        %v263 = vadd.f32 %v262, %v256
        %v264 = vadd.f32 %v263, %v257
        %265 = vadd.xlane.f32.xlu0 %v264
        %v266 = vpop.xlane.xlu0 %265
        %v267 = vlaneseq
        %v268 = vshrl.u32 %v267, 7
        %v269 = vsub.s32 2, %v268
        %v270 = vrot.slane %v161, %v269
        %v271 = vlaneseq
        %v272 = vshrl.u32 %v271, 7
        %v273 = vsub.s32 2, %v272
        %v274 = vrot.slane %v162, %v273
        %v275 = vlaneseq
        %v276 = vshrl.u32 %v275, 7
        %v277 = vsub.s32 2, %v276
        %v278 = vrot.slane %v163, %v277
        %v279 = vlaneseq
        %v280 = vshrl.u32 %v279, 7
        %v281 = vsub.s32 2, %v280
        %v282 = vrot.slane %v164, %v281
        %v283 = vlaneseq
        %v284 = vshrl.u32 %v283, 7
        %v285 = vsub.s32 2, %v284
        %v286 = vrot.slane %v165, %v285
        %v287 = vlaneseq
        %v288 = vshrl.u32 %v287, 7
        %v289 = vsub.s32 2, %v288
        %v290 = vrot.slane %v166, %v289
        %v291 = vlaneseq
        %v292 = vshrl.u32 %v291, 7
        %v293 = vsub.s32 2, %v292
        %v294 = vrot.slane %v167, %v293
        %v295 = vlaneseq
        %v296 = vshrl.u32 %v295, 7
        %v297 = vsub.s32 2, %v296
        %v298 = vrot.slane %v168, %v297
        %v299 = vmul.f32 %v161, %v270
        %v300 = vmul.f32 %v162, %v274
        %v301 = vmul.f32 %v163, %v278
        %v302 = vmul.f32 %v164, %v282
        %v303 = vmul.f32 %v165, %v286
        %v304 = vmul.f32 %v166, %v290
        %v305 = vmul.f32 %v167, %v294
        %v306 = vmul.f32 %v168, %v298
        %v307 = vadd.f32 %v299, %v300
        %v308 = vadd.f32 %v307, %v301
        %v309 = vadd.f32 %v308, %v302
        %v310 = vadd.f32 %v309, %v303
        %v311 = vadd.f32 %v310, %v304
        %v312 = vadd.f32 %v311, %v305
        %v313 = vadd.f32 %v312, %v306
        %314 = vadd.xlane.f32.xlu0 %v313
        %v315 = vpop.xlane.xlu0 %314
        %v316 = vlaneseq
        %v317 = vshrl.u32 %v316, 7
        %v318 = vsub.s32 3, %v317
        %v319 = vrot.slane %v161, %v318
        %v320 = vlaneseq
        %v321 = vshrl.u32 %v320, 7
        %v322 = vsub.s32 3, %v321
        %v323 = vrot.slane %v162, %v322
        %v324 = vlaneseq
        %v325 = vshrl.u32 %v324, 7
        %v326 = vsub.s32 3, %v325
        %v327 = vrot.slane %v163, %v326
        %v328 = vlaneseq
        %v329 = vshrl.u32 %v328, 7
        %v330 = vsub.s32 3, %v329
        %v331 = vrot.slane %v164, %v330
        %v332 = vlaneseq
        %v333 = vshrl.u32 %v332, 7
        %v334 = vsub.s32 3, %v333
        %v335 = vrot.slane %v165, %v334
        %v336 = vlaneseq
        %v337 = vshrl.u32 %v336, 7
        %v338 = vsub.s32 3, %v337
        %v339 = vrot.slane %v166, %v338
        %v340 = vlaneseq
        %v341 = vshrl.u32 %v340, 7
        %v342 = vsub.s32 3, %v341
        %v343 = vrot.slane %v167, %v342
        %v344 = vlaneseq
        %v345 = vshrl.u32 %v344, 7
        %v346 = vsub.s32 3, %v345
        %v347 = vrot.slane %v168, %v346
        %v348 = vmul.f32 %v161, %v319
        %v349 = vmul.f32 %v162, %v323
        %v350 = vmul.f32 %v163, %v327
        %v351 = vmul.f32 %v164, %v331
        %v352 = vmul.f32 %v165, %v335
        %v353 = vmul.f32 %v166, %v339
        %v354 = vmul.f32 %v167, %v343
        %v355 = vmul.f32 %v168, %v347
        %v356 = vadd.f32 %v348, %v349
        %v357 = vadd.f32 %v356, %v350
        %v358 = vadd.f32 %v357, %v351
        %v359 = vadd.f32 %v358, %v352
        %v360 = vadd.f32 %v359, %v353
        %v361 = vadd.f32 %v360, %v354
        %v362 = vadd.f32 %v361, %v355
        %363 = vadd.xlane.f32.xlu0 %v362
        %v364 = vpop.xlane.xlu0 %363
        %v365 = vlaneseq
        %v366 = vshrl.u32 %v365, 7
        %v367 = vsub.s32 4, %v366
        %v368 = vrot.slane %v161, %v367
        %v369 = vlaneseq
        %v370 = vshrl.u32 %v369, 7
        %v371 = vsub.s32 4, %v370
        %v372 = vrot.slane %v162, %v371
        %v373 = vlaneseq
        %v374 = vshrl.u32 %v373, 7
        %v375 = vsub.s32 4, %v374
        %v376 = vrot.slane %v163, %v375
        %v377 = vlaneseq
        %v378 = vshrl.u32 %v377, 7
        %v379 = vsub.s32 4, %v378
        %v380 = vrot.slane %v164, %v379
        %v381 = vlaneseq
        %v382 = vshrl.u32 %v381, 7
        %v383 = vsub.s32 4, %v382
        %v384 = vrot.slane %v165, %v383
        %v385 = vlaneseq
        %v386 = vshrl.u32 %v385, 7
        %v387 = vsub.s32 4, %v386
        %v388 = vrot.slane %v166, %v387
        %v389 = vlaneseq
        %v390 = vshrl.u32 %v389, 7
        %v391 = vsub.s32 4, %v390
        %v392 = vrot.slane %v167, %v391
        %v393 = vlaneseq
        %v394 = vshrl.u32 %v393, 7
        %v395 = vsub.s32 4, %v394
        %v396 = vrot.slane %v168, %v395
        %v397 = vmul.f32 %v161, %v368
        %v398 = vmul.f32 %v162, %v372
        %v399 = vmul.f32 %v163, %v376
        %v400 = vmul.f32 %v164, %v380
        %v401 = vmul.f32 %v165, %v384
        %v402 = vmul.f32 %v166, %v388
        %v403 = vmul.f32 %v167, %v392
        %v404 = vmul.f32 %v168, %v396
        %v405 = vadd.f32 %v397, %v398
        %v406 = vadd.f32 %v405, %v399
        %v407 = vadd.f32 %v406, %v400
        %v408 = vadd.f32 %v407, %v401
        %v409 = vadd.f32 %v408, %v402
        %v410 = vadd.f32 %v409, %v403
        %v411 = vadd.f32 %v410, %v404
        %412 = vadd.xlane.f32.xlu0 %v411
        %v413 = vpop.xlane.xlu0 %412
        %v414 = vlaneseq
        %v415 = vshrl.u32 %v414, 7
        %v416 = vsub.s32 5, %v415
        %v417 = vrot.slane %v161, %v416
        %v418 = vlaneseq
        %v419 = vshrl.u32 %v418, 7
        %v420 = vsub.s32 5, %v419
        %v421 = vrot.slane %v162, %v420
        %v422 = vlaneseq
        %v423 = vshrl.u32 %v422, 7
        %v424 = vsub.s32 5, %v423
        %v425 = vrot.slane %v163, %v424
        %v426 = vlaneseq
        %v427 = vshrl.u32 %v426, 7
        %v428 = vsub.s32 5, %v427
        %v429 = vrot.slane %v164, %v428
        %v430 = vlaneseq
        %v431 = vshrl.u32 %v430, 7
        %v432 = vsub.s32 5, %v431
        %v433 = vrot.slane %v165, %v432
        %v434 = vlaneseq
        %v435 = vshrl.u32 %v434, 7
        %v436 = vsub.s32 5, %v435
        %v437 = vrot.slane %v166, %v436
        %v438 = vlaneseq
        %v439 = vshrl.u32 %v438, 7
        %v440 = vsub.s32 5, %v439
        %v441 = vrot.slane %v167, %v440
        %v442 = vlaneseq
        %v443 = vshrl.u32 %v442, 7
        %v444 = vsub.s32 5, %v443
        %v445 = vrot.slane %v168, %v444
        %v446 = vmul.f32 %v161, %v417
        %v447 = vmul.f32 %v162, %v421
        %v448 = vmul.f32 %v163, %v425
        %v449 = vmul.f32 %v164, %v429
        %v450 = vmul.f32 %v165, %v433
        %v451 = vmul.f32 %v166, %v437
        %v452 = vmul.f32 %v167, %v441
        %v453 = vmul.f32 %v168, %v445
        %v454 = vadd.f32 %v446, %v447
        %v455 = vadd.f32 %v454, %v448
        %v456 = vadd.f32 %v455, %v449
        %v457 = vadd.f32 %v456, %v450
        %v458 = vadd.f32 %v457, %v451
        %v459 = vadd.f32 %v458, %v452
        %v460 = vadd.f32 %v459, %v453
        %461 = vadd.xlane.f32.xlu0 %v460
        %v462 = vpop.xlane.xlu0 %461
        %v463 = vlaneseq
        %v464 = vshrl.u32 %v463, 7
        %v465 = vsub.s32 6, %v464
        %v466 = vrot.slane %v161, %v465
        %v467 = vlaneseq
        %v468 = vshrl.u32 %v467, 7
        %v469 = vsub.s32 6, %v468
        %v470 = vrot.slane %v162, %v469
        %v471 = vlaneseq
        %v472 = vshrl.u32 %v471, 7
        %v473 = vsub.s32 6, %v472
        %v474 = vrot.slane %v163, %v473
        %v475 = vlaneseq
        %v476 = vshrl.u32 %v475, 7
        %v477 = vsub.s32 6, %v476
        %v478 = vrot.slane %v164, %v477
        %v479 = vlaneseq
        %v480 = vshrl.u32 %v479, 7
        %v481 = vsub.s32 6, %v480
        %v482 = vrot.slane %v165, %v481
        %v483 = vlaneseq
        %v484 = vshrl.u32 %v483, 7
        %v485 = vsub.s32 6, %v484
        %v486 = vrot.slane %v166, %v485
        %v487 = vlaneseq
        %v488 = vshrl.u32 %v487, 7
        %v489 = vsub.s32 6, %v488
        %v490 = vrot.slane %v167, %v489
        %v491 = vlaneseq
        %v492 = vshrl.u32 %v491, 7
        %v493 = vsub.s32 6, %v492
        %v494 = vrot.slane %v168, %v493
        %v495 = vmul.f32 %v161, %v466
        %v496 = vmul.f32 %v162, %v470
        %v497 = vmul.f32 %v163, %v474
        %v498 = vmul.f32 %v164, %v478
        %v499 = vmul.f32 %v165, %v482
        %v500 = vmul.f32 %v166, %v486
        %v501 = vmul.f32 %v167, %v490
        %v502 = vmul.f32 %v168, %v494
        %v503 = vadd.f32 %v495, %v496
        %v504 = vadd.f32 %v503, %v497
        %v505 = vadd.f32 %v504, %v498
        %v506 = vadd.f32 %v505, %v499
        %v507 = vadd.f32 %v506, %v500
        %v508 = vadd.f32 %v507, %v501
        %v509 = vadd.f32 %v508, %v502
        %510 = vadd.xlane.f32.xlu0 %v509
        %v511 = vpop.xlane.xlu0 %510
        %v512 = vlaneseq
        %v513 = vshrl.u32 %v512, 7
        %v514 = vsub.s32 7, %v513
        %v515 = vrot.slane %v161, %v514
        %v516 = vlaneseq
        %v517 = vshrl.u32 %v516, 7
        %v518 = vsub.s32 7, %v517
        %v519 = vrot.slane %v162, %v518
        %v520 = vlaneseq
        %v521 = vshrl.u32 %v520, 7
        %v522 = vsub.s32 7, %v521
        %v523 = vrot.slane %v163, %v522
        %v524 = vlaneseq
        %v525 = vshrl.u32 %v524, 7
        %v526 = vsub.s32 7, %v525
        %v527 = vrot.slane %v164, %v526
        %v528 = vlaneseq
        %v529 = vshrl.u32 %v528, 7
        %v530 = vsub.s32 7, %v529
        %v531 = vrot.slane %v165, %v530
        %v532 = vlaneseq
        %v533 = vshrl.u32 %v532, 7
        %v534 = vsub.s32 7, %v533
        %v535 = vrot.slane %v166, %v534
        %v536 = vlaneseq
        %v537 = vshrl.u32 %v536, 7
        %v538 = vsub.s32 7, %v537
        %v539 = vrot.slane %v167, %v538
        %v540 = vlaneseq
        %v541 = vshrl.u32 %v540, 7
        %v542 = vsub.s32 7, %v541
        %v543 = vrot.slane %v168, %v542
        %v544 = vmul.f32 %v161, %v515
        %v545 = vmul.f32 %v162, %v519
        %v546 = vmul.f32 %v163, %v523
        %v547 = vmul.f32 %v164, %v527
        %v548 = vmul.f32 %v165, %v531
        %v549 = vmul.f32 %v166, %v535
        %v550 = vmul.f32 %v167, %v539
        %v551 = vmul.f32 %v168, %v543
        %v552 = vadd.f32 %v544, %v545
        %v553 = vadd.f32 %v552, %v546
        %v554 = vadd.f32 %v553, %v547
        %v555 = vadd.f32 %v554, %v548
        %v556 = vadd.f32 %v555, %v549
        %v557 = vadd.f32 %v556, %v550
        %v558 = vadd.f32 %v557, %v551
        %559 = vadd.xlane.f32.xlu0 %v558
        %v560 = vpop.xlane.xlu0 %559
        %vm561 = vcmask 7168
        %v562 = vsel %vm561, %v217, %v266
        %vm563 = vcmask 15360
        %v564 = vsel %vm563, %v562, %v315
        %vm565 = vcmask 23552
        %v566 = vsel %vm565, %v564, %v364
        %vm567 = vcmask 31744
        %v568 = vsel %vm567, %v566, %v413
        %vm569 = vcmask 39936
        %v570 = vsel %vm569, %v568, %v462
        %vm571 = vcmask 48128
        %v572 = vsel %vm571, %v570, %v511
        %vm573 = vcmask 56320
        %v574 = vsel %vm573, %v572, %v560
        %s575 = sld [smem:[#allocation2]]
        %v576 = vlaneseq
        %v577 = vshrl.u32 %v576, 7
        %v578 = vlaneseq
        %v579 = vand.u32 %v578, 127
        %vm580 = vcmp.eq.s32.totalorder %v577, %v579
        %v581 = vsel %vm580, %v574, 0.0
        %vm582 = vcmask 64512
        %v583 = vsel %vm582, %v581, 0.0
        %584 = vadd.xlane.f32.xlu0 %v583
        %v585 = vpop.xlane.xlu0 %584
        %v586 = vrot.slane %v583, 4
        %v587 = vadd.f32 %v583, %v586
        %v588 = vrot.slane %v587, 2
        %v589 = vadd.f32 %v587, %v588
        %v590 = vrot.slane %v589, 1
        %v591 = vadd.f32 %v589, %v590
        %v592 = vmax.f32 %v585, 1e-24
        %v593 = vrsqrt.pop %v592
        %v594 = vmax.f32 %v591, 1e-24
        %v595 = vrsqrt.pop %v594
        %v596 = vmul.f32 %v574, %v593
        %v597 = vmul.f32 %v596, %v595
        %v598 = vsel %vm582, %v597, -inf
        %599 = vmax.xlane.f32.xlu0 %v598
        %v600 = vpop.xlane.xlu0 %599
        %v601 = vsub.f32 %v600, %v597
        %v602 = vmul.f32 %v601, 1.442695
        %v603 = vpow.pop %v602
        %v604 = vsel %vm582, %v603, 0.0
        %605 = vadd.xlane.f32.xlu0 %v604
        %v606 = vpop.xlane.xlu0 %605
        %v607 = vrcp.pop %v606
        %v608 = vmul.f32 %v603, %v607
        %v609 = vstv %s575
        %v610 = vmul.f32 %v609, %v608
        %612 = vset.pattern.permute.xlu0 0
        %613 = vperm.xlu0 %612, %v610
        %v614 = vpop.permute.xlu0 %613
        %v616 = vmul.f32 %v614, %v172
        %v617 = vmul.f32 %v614, %v176
        %v618 = vmul.f32 %v614, %v180
        %v619 = vmul.f32 %v614, %v184
        %v620 = vmul.f32 %v614, %v188
        %v621 = vmul.f32 %v614, %v192
        %v622 = vmul.f32 %v614, %v196
        %v623 = vmul.f32 %v614, %v200
        %v624 = vadd.f32 %v161, %v616
        %v625 = vadd.f32 %v162, %v617
        %v626 = vadd.f32 %v163, %v618
        %v627 = vadd.f32 %v164, %v619
        %v628 = vadd.f32 %v165, %v620
        %v629 = vadd.f32 %v166, %v621
        %v630 = vadd.f32 %v167, %v622
        %v631 = vadd.f32 %v168, %v623
        %632 = vset.pattern.permute.xlu0 1
        %633 = vperm.xlu0 %632, %v610
        %v634 = vpop.permute.xlu0 %633
        %v636 = vmul.f32 %v634, %v221
        %v637 = vmul.f32 %v634, %v225
        %v638 = vmul.f32 %v634, %v229
        %v639 = vmul.f32 %v634, %v233
        %v640 = vmul.f32 %v634, %v237
        %v641 = vmul.f32 %v634, %v241
        %v642 = vmul.f32 %v634, %v245
        %v643 = vmul.f32 %v634, %v249
        %v644 = vadd.f32 %v624, %v636
        %v645 = vadd.f32 %v625, %v637
        %v646 = vadd.f32 %v626, %v638
        %v647 = vadd.f32 %v627, %v639
        %v648 = vadd.f32 %v628, %v640
        %v649 = vadd.f32 %v629, %v641
        %v650 = vadd.f32 %v630, %v642
        %v651 = vadd.f32 %v631, %v643
        %652 = vset.pattern.permute.xlu0 2
        %653 = vperm.xlu0 %652, %v610
        %v654 = vpop.permute.xlu0 %653
        %v656 = vmul.f32 %v654, %v270
        %v657 = vmul.f32 %v654, %v274
        %v658 = vmul.f32 %v654, %v278
        %v659 = vmul.f32 %v654, %v282
        %v660 = vmul.f32 %v654, %v286
        %v661 = vmul.f32 %v654, %v290
        %v662 = vmul.f32 %v654, %v294
        %v663 = vmul.f32 %v654, %v298
        %v664 = vadd.f32 %v644, %v656
        %v665 = vadd.f32 %v645, %v657
        %v666 = vadd.f32 %v646, %v658
        %v667 = vadd.f32 %v647, %v659
        %v668 = vadd.f32 %v648, %v660
        %v669 = vadd.f32 %v649, %v661
        %v670 = vadd.f32 %v650, %v662
        %v671 = vadd.f32 %v651, %v663
        %672 = vset.pattern.permute.xlu0 3
        %673 = vperm.xlu0 %672, %v610
        %v674 = vpop.permute.xlu0 %673
        %v676 = vmul.f32 %v674, %v319
        %v677 = vmul.f32 %v674, %v323
        %v678 = vmul.f32 %v674, %v327
        %v679 = vmul.f32 %v674, %v331
        %v680 = vmul.f32 %v674, %v335
        %v681 = vmul.f32 %v674, %v339
        %v682 = vmul.f32 %v674, %v343
        %v683 = vmul.f32 %v674, %v347
        %v684 = vadd.f32 %v664, %v676
        %v685 = vadd.f32 %v665, %v677
        %v686 = vadd.f32 %v666, %v678
        %v687 = vadd.f32 %v667, %v679
        %v688 = vadd.f32 %v668, %v680
        %v689 = vadd.f32 %v669, %v681
        %v690 = vadd.f32 %v670, %v682
        %v691 = vadd.f32 %v671, %v683
        %692 = vset.pattern.permute.xlu0 4
        %693 = vperm.xlu0 %692, %v610
        %v694 = vpop.permute.xlu0 %693
        %v696 = vmul.f32 %v694, %v368
        %v697 = vmul.f32 %v694, %v372
        %v698 = vmul.f32 %v694, %v376
        %v699 = vmul.f32 %v694, %v380
        %v700 = vmul.f32 %v694, %v384
        %v701 = vmul.f32 %v694, %v388
        %v702 = vmul.f32 %v694, %v392
        %v703 = vmul.f32 %v694, %v396
        %v704 = vadd.f32 %v684, %v696
        %v705 = vadd.f32 %v685, %v697
        %v706 = vadd.f32 %v686, %v698
        %v707 = vadd.f32 %v687, %v699
        %v708 = vadd.f32 %v688, %v700
        %v709 = vadd.f32 %v689, %v701
        %v710 = vadd.f32 %v690, %v702
        %v711 = vadd.f32 %v691, %v703
        %712 = vset.pattern.permute.xlu0 5
        %713 = vperm.xlu0 %712, %v610
        %v714 = vpop.permute.xlu0 %713
        %v716 = vmul.f32 %v714, %v417
        %v717 = vmul.f32 %v714, %v421
        %v718 = vmul.f32 %v714, %v425
        %v719 = vmul.f32 %v714, %v429
        %v720 = vmul.f32 %v714, %v433
        %v721 = vmul.f32 %v714, %v437
        %v722 = vmul.f32 %v714, %v441
        %v723 = vmul.f32 %v714, %v445
        %v724 = vadd.f32 %v704, %v716
        %v725 = vadd.f32 %v705, %v717
        %v726 = vadd.f32 %v706, %v718
        %v727 = vadd.f32 %v707, %v719
        %v728 = vadd.f32 %v708, %v720
        %v729 = vadd.f32 %v709, %v721
        %v730 = vadd.f32 %v710, %v722
        %v731 = vadd.f32 %v711, %v723
        %732 = vset.pattern.permute.xlu0 6
        %733 = vperm.xlu0 %732, %v610
        %v734 = vpop.permute.xlu0 %733
        %v736 = vmul.f32 %v734, %v466
        %v737 = vmul.f32 %v734, %v470
        %v738 = vmul.f32 %v734, %v474
        %v739 = vmul.f32 %v734, %v478
        %v740 = vmul.f32 %v734, %v482
        %v741 = vmul.f32 %v734, %v486
        %v742 = vmul.f32 %v734, %v490
        %v743 = vmul.f32 %v734, %v494
        %v744 = vadd.f32 %v724, %v736
        %v745 = vadd.f32 %v725, %v737
        %v746 = vadd.f32 %v726, %v738
        %v747 = vadd.f32 %v727, %v739
        %v748 = vadd.f32 %v728, %v740
        %v749 = vadd.f32 %v729, %v741
        %v750 = vadd.f32 %v730, %v742
        %v751 = vadd.f32 %v731, %v743
        %752 = vset.pattern.permute.xlu0 7
        %753 = vperm.xlu0 %752, %v610
        %v754 = vpop.permute.xlu0 %753
        %v756 = vmul.f32 %v754, %v515
        %v757 = vmul.f32 %v754, %v519
        %v758 = vmul.f32 %v754, %v523
        %v759 = vmul.f32 %v754, %v527
        %v760 = vmul.f32 %v754, %v531
        %v761 = vmul.f32 %v754, %v535
        %v762 = vmul.f32 %v754, %v539
        %v763 = vmul.f32 %v754, %v543
        %v764 = vadd.f32 %v744, %v756
        %v765 = vadd.f32 %v745, %v757
        %v766 = vadd.f32 %v746, %v758
        %v767 = vadd.f32 %v747, %v759
        %v768 = vadd.f32 %v748, %v760
        %v769 = vadd.f32 %v749, %v761
        %v770 = vadd.f32 %v750, %v762
        %v771 = vadd.f32 %v751, %v763
        %772 = vst [vmem:[%s160] sm:$0xff] %v764
        %773 = vst [vmem:[%s160 + $0x8] sm:$0xff] %v765
        %774 = vst [vmem:[%s160 + $0x10] sm:$0xff] %v766
        %775 = vst [vmem:[%s160 + $0x18] sm:$0xff] %v767
        %776 = vst [vmem:[%s160 + $0x20] sm:$0xff] %v768
        %777 = vst [vmem:[%s160 + $0x28] sm:$0xff] %v769
        %778 = vst [vmem:[%s160 + $0x30] sm:$0xff] %v770
        %779 = vst [vmem:[%s160 + $0x38] sm:$0xff] %v771
        %s780 = sand.u32 %s75, 1
        %s781 = scalar_lea.sflag [#allocation5], %s780
        %s782 = sand.u32 %s75, 1
        %s783 = smul.addr %s782, 64
        %s784 = scalar_lea.vmem [#allocation6], %s783
        // Predicated region
        $region33: #{tpu_custom_call.1} parent=27 // pred_check
          %p785 = pneg %p85
        $region34: #{tpu_custom_call.1} parent=27 // pred_check_branch
          %787 = sbr.rel (%p785) target = $region36
        $region35: #{tpu_custom_call.1} parent=27 // pred_region
          %s789 = ssub.s32 1024, 1024
          %790 = vsyncadd %s781, %s789
          %s791 = smul.addr %s20, 8
          %s792 = smul.addr %s791, 128
          %s793 = scalar_lea.hbm %s2, %s792
          %s795 = sshll.u32 %s784, 4
          %s796 = int_to_ptr.vmem [resolvable:$true] %s795
          %798 = dma.vmem_to_hbm [thread:$0]  %s796, 1024, %s793, %s781
        $region36: #{tpu_custom_call.1} parent=27 // pred_fallthru
          _
      $region28: #{tpu_custom_call.1} parent=5 // pred_fallthru
        _
      %p799 = scmp.le.s32.totalorder 2, %s15
      // Predicated region
      $region37: #{tpu_custom_call.1} parent=5 // pred_check
        %p800 = pneg %p799
      $region38: #{tpu_custom_call.1} parent=5 // pred_check_branch
        %802 = sbr.rel (%p800) target = $region40
      $region39: #{tpu_custom_call.1} parent=5 // pred_region
        %s803 = ssub.s32 %s15, 2
        // Predicated region
        $region41: #{tpu_custom_call.1} parent=39 // pred_check
          %p804 = pneg %p91
        $region42: #{tpu_custom_call.1} parent=39 // pred_check_branch
          %806 = sbr.rel (%p804) target = $region44
        $region43: #{tpu_custom_call.1} parent=39 // pred_region
          %s807 = sand.u32 %s76, 1
          %s808 = scalar_lea.sflag [#allocation5], %s807
          %s809 = sand.u32 %s76, 1
          %s810 = smul.addr %s809, 64
          %s811 = scalar_lea.vmem [#allocation6], %s810
          %812 = dma.done %s808, 1024
        $region44: #{tpu_custom_call.1} parent=39 // pred_fallthru
          _
      $region40: #{tpu_custom_call.1} parent=5 // pred_fallthru
        _
    $region6: #{tpu_custom_call.1} parent=1 // loop_footer
      %s19 = sadd.s32 1, %s15
    $region7: #{tpu_custom_call.1} parent=1 // loop_footer_branch
      %14 = sbr.rel target = $region3
    $region8: #{tpu_custom_call.1} parent=1 // loop_exit
      _
    %813 = vsyncpa [#allocation4], 1
    %s814 = scalar_lea.sflag [#allocation4], 1
    %815 = vsyncpa %s814, 1
    %816 = vsyncpa [#allocation5], 1
    %s817 = scalar_lea.sflag [#allocation5], 1
    %818 = vsyncpa %s817, 1

</llo_original>
